<compile_context>
chip_gen: v5e
topology: v5e:2x2
jax: 0.10.0
libtpu: 0.0.40
codegen_flags: <defaults>
</compile_context>

<pallas_src>
import functools
import math

import jax
import jax.numpy as jnp
from jax import lax
from jax.experimental import pallas as pl
from jax.experimental.pallas import tpu as pltpu

_MASK_VAL = -1e30  # f32-safe "minus infinity" for masked logits


# ----------------------------------------------------------------------------
# Pallas kernel: fused (channel-major) QKV projection + causal flash attention
# ----------------------------------------------------------------------------
def _flash_attention_kernel(xq_ref, xkv_ref, wq_ref, wkv_ref, pq_ref, pkv_ref,
                            o_ref, m_sc, l_sc, acc_sc, *, scale, ck):
    qi = pl.program_id(1)
    ki = pl.program_id(2)

    @pl.when(ki == 0)
    def _init():
        m_sc[...] = jnp.full_like(m_sc, -jnp.inf)
        l_sc[...] = jnp.zeros_like(l_sc)
        acc_sc[...] = jnp.zeros_like(acc_sc)

    def _step(masked):
        # 1x1x1 conv == per-pixel linear, done channel-major so outputs are
        # lane-dense: (Cout, C) @ (C, t) -> (Cout, t).  The positional-encoding
        # contribution + conv bias arrive pre-projected as per-position rows.
        qT = jnp.dot(wq_ref[...], xq_ref[...],
                     preferred_element_type=jnp.float32) + pq_ref[...]      # (ck, tq)
        kvT = jnp.dot(wkv_ref[...], xkv_ref[...],
                      preferred_element_type=jnp.float32) + pkv_ref[...]    # (ck+cv, tk)
        kT = kvT[:ck, :]                                                    # (ck, tk)
        vT = kvT[ck:, :]                                                    # (cv, tk)

        # logits with kv on sublanes, q on lanes: s[k, q]
        s = lax.dot_general(kT, qT, (((0,), (0,)), ((), ())),
                            preferred_element_type=jnp.float32) * scale     # (tk, tq)

        if masked:
            tk, tq = s.shape
            gk = ki * tk + lax.broadcasted_iota(jnp.int32, (tk, tq), 0)
            gq = qi * tq + lax.broadcasted_iota(jnp.int32, (tk, tq), 1)
            mask = gk < gq          # causal_mask(..., mask_center=True): col < row
            s = jnp.where(mask, s, _MASK_VAL)

        m_prev = m_sc[...]                                                  # (1, tq)
        m_new = jnp.maximum(m_prev, jnp.max(s, axis=0, keepdims=True))
        alpha = jnp.exp(m_prev - m_new)
        p = jnp.exp(s - m_new)
        if masked:
            p = jnp.where(mask, p, 0.0)
        l_sc[...] = alpha * l_sc[...] + jnp.sum(p, axis=0, keepdims=True)
        acc_sc[...] = alpha * acc_sc[...] + jnp.dot(
            vT, p, preferred_element_type=jnp.float32)                      # (cv, tq)
        m_sc[...] = m_new

    @pl.when(ki < qi)        # interior blocks: fully unmasked, no where work
    def _interior():
        _step(masked=False)

    @pl.when(ki == qi)       # diagonal block: apply strict-causal mask, finalize
    def _diag_and_finalize():
        _step(masked=True)
        l = l_sc[...]
        # fully-masked rows (global row 0) have l == 0 -> output 0, matching
        # torch's softmax(-inf row) -> nan -> masked_fill(..., 0).
        inv = jnp.where(l > 0.0, pl.reciprocal(l, approx=True), 0.0)
        o_ref[...] = (acc_sc[...] * inv).astype(o_ref.dtype)
    # ki > qi: block is entirely above the (strict) causal diagonal -> skipped.


# ----------------------------------------------------------------------------
# Wrapper: layout plumbing + pallas_call
# ----------------------------------------------------------------------------
def _positional_sequence(t, h, w):
    """(S, 3) per-position [pos_t, pos_h, pos_w] in flatten order of (T,H,W)."""
    pt = jnp.arange(t, dtype=jnp.float32) / t - 0.5
    ph = jnp.arange(h, dtype=jnp.float32) / h - 0.5
    pw = jnp.arange(w, dtype=jnp.float32) / w - 0.5
    s = t * h * w
    pos_t = jnp.broadcast_to(pt[:, None, None], (t, h, w)).reshape(s)
    pos_h = jnp.broadcast_to(ph[None, :, None], (t, h, w)).reshape(s)
    pos_w = jnp.broadcast_to(pw[None, None, :], (t, h, w)).reshape(s)
    return jnp.stack([pos_t, pos_h, pos_w], axis=1)


def _pick_tile(s):
    # largest tile that keeps block last-dims (8,128)-legal; fall back to full S
    for t in (512, 256, 128):
        if s % t == 0:
            return t
    return s


def attention_block_forward(x, params):
    """x: (B, C, T, H, W) float32.  Returns (B, value_channels, T, H, W)."""
    b, c, t, h, w = x.shape
    s = t * h * w

    # channel-major sequence layout: pure reshape, no transpose / concat
    x_cm = x.reshape(b, c, s)                       # (B, C, S)

    wq, bq = params["wq"], params["bq"]             # (C+3, Ck), (1, Ck)
    wk, bk = params["wk"], params["bk"]
    wv, bv = params["wv"], params["bv"]             # (C+3, Cv), (1, Cv)
    ck = wq.shape[1]
    cv = wv.shape[1]

    # fuse K and V projections
    w_kv = jnp.concatenate([wk, wv], axis=1)        # (C+3, Ck+Cv)
    b_kv = jnp.concatenate([bk, bv], axis=1)        # (1, Ck+Cv)

    # fold positional-channel projection + conv bias into per-position rows
    pos = _positional_sequence(t, h, w)             # (S, 3)
    pos_q_T = (pos @ wq[c:, :] + bq).T              # (Ck, S)
    pos_kv_T = (pos @ w_kv[c:, :] + b_kv).T         # (Ck+Cv, S)
    wq_T = wq[:c, :].T                              # (Ck, C)
    wkv_T = w_kv[:c, :].T                           # (Ck+Cv, C)

    tile = _pick_tile(s)
    n_tiles = s // tile
    scale = 1.0 / math.sqrt(c)                      # torch divides by sqrt(C)

    kernel = functools.partial(_flash_attention_kernel, scale=scale, ck=ck)

    out_cm = pl.pallas_call(
        kernel,
        out_shape=jax.ShapeDtypeStruct((b, cv, s), jnp.float32),
        grid_spec=pltpu.PrefetchScalarGridSpec(
            num_scalar_prefetch=0,
            grid=(b, n_tiles, n_tiles),
            in_specs=[
                # x tile for the query rows
                pl.BlockSpec((None, c, tile), lambda bi, qi, ki: (bi, 0, qi)),
                # x tile for the key/value rows
                pl.BlockSpec((None, c, tile), lambda bi, qi, ki: (bi, 0, ki)),
                # weights (x-channel part, transposed)
                pl.BlockSpec((ck, c), lambda bi, qi, ki: (0, 0)),
                pl.BlockSpec((ck + cv, c), lambda bi, qi, ki: (0, 0)),
                # pre-projected positional biases
                pl.BlockSpec((ck, tile), lambda bi, qi, ki: (0, qi)),
                pl.BlockSpec((ck + cv, tile), lambda bi, qi, ki: (0, ki)),
            ],
            out_specs=pl.BlockSpec((None, cv, tile),
                                   lambda bi, qi, ki: (bi, 0, qi)),
            scratch_shapes=[
                pltpu.VMEM((1, tile), jnp.float32),    # running max
                pltpu.VMEM((1, tile), jnp.float32),    # running denom
                pltpu.VMEM((cv, tile), jnp.float32),   # output accumulator
            ],
        ),
        compiler_params=pltpu.CompilerParams(
            dimension_semantics=("parallel", "parallel", "arbitrary")),
    )(x_cm, x_cm, wq_T, wkv_T, pos_q_T, pos_kv_T)

    # (B, Cv, S) -> (B, Cv, T, H, W): pure reshape, transpose already done
    return out_cm.reshape(b, cv, t, h, w)


# ----------------------------------------------------------------------------
# Deterministic parameter init (Conv3d 1x1x1 kernels == linear weights)
# ----------------------------------------------------------------------------
def init_params(key, in_channels, key_channels, value_channels):
    cin3 = in_channels + 3
    ks = jax.random.split(key, 6)

    def uniform(k, shape, fan_in):
        bound = 1.0 / math.sqrt(fan_in)
        return jax.random.uniform(k, shape, jnp.float32, -bound, bound)

    # Stored transposed: (Cin+3, Cout) so that x_seq @ W works directly.
    return {
        "wq": uniform(ks[0], (cin3, key_channels), cin3),
        "bq": uniform(ks[1], (1, key_channels), cin3),
        "wk": uniform(ks[2], (cin3, key_channels), cin3),
        "bk": uniform(ks[3], (1, key_channels), cin3),
        "wv": uniform(ks[4], (cin3, value_channels), cin3),
        "bv": uniform(ks[5], (1, value_channels), cin3),
    }


# ----------------------------------------------------------------------------
# Pure-JAX reference (mirrors the PyTorch forward) for a correctness check
# ----------------------------------------------------------------------------
def positional_encoding(shape):
    b, _, t, h, w = shape
    pt = (jnp.arange(t, dtype=jnp.float32) / t - 0.5)[None, None, :, None, None]
    ph = (jnp.arange(h, dtype=jnp.float32) / h - 0.5)[None, None, None, :, None]
    pw = (jnp.arange(w, dtype=jnp.float32) / w - 0.5)[None, None, None, None, :]
    zeros = jnp.zeros((b, 1, t, h, w), jnp.float32)
    return jnp.concatenate((pt + zeros, ph + zeros, pw + zeros), axis=1)


def reference_forward(x, params):
    b, c, t, h, w = x.shape
    s = t * h * w
    xc = jnp.concatenate((x, positional_encoding(x.shape)), axis=1)
    x_seq = xc.reshape(b, c + 3, s).transpose(0, 2, 1)
    q = x_seq @ params["wq"] + params["bq"]
    k = x_seq @ params["wk"] + params["bk"]
    v = x_seq @ params["wv"] + params["bv"]
    att = jnp.einsum("bqc,bkc->bqk", q, k) / math.sqrt(c)
    mask = jnp.tril(jnp.ones((s, s)), k=-1)
    att = jnp.where(mask == 0, -jnp.inf, att)
    att = jax.nn.softmax(att, axis=-1)
    att = jnp.where(mask == 0, 0.0, att)
    att = jnp.nan_to_num(att)
    out = jnp.einsum("bqk,bkc->bqc", att, v)
    return out.transpose(0, 2, 1).reshape(b, v.shape[-1], t, h, w)


if __name__ == "__main__":
    key = jax.random.PRNGKey(0)
    kx, kp = jax.random.split(key)

    # Small shapes consistent with the module's forward semantics.
    B, C, T, H, W = 2, 4, 2, 4, 4          # x: (B, C, T, H, W), seq = T*H*W = 32
    KEY_CH, VAL_CH = 8, 16

    x = jax.random.normal(kx, (B, C, T, H, W), jnp.float32)
    params = init_params(kp, C, KEY_CH, VAL_CH)

    out = attention_block_forward(x, params)
    out = jax.block_until_ready(out)

    ref = reference_forward(x, params)
    assert out.shape == (B, VAL_CH, T, H, W), out.shape
    max_err = jnp.max(jnp.abs(out - ref))
    assert jnp.allclose(out, ref, atol=2e-3, rtol=2e-3), f"mismatch: {max_err}"

    print("KERNEL_OK")
</pallas_src>

<mosaic_0001>
module attributes {stable_mosaic.version = 11 : i64} {
  func.func @_flash_attention_kernel(%arg0: i32, %arg1: i32, %arg2: i32, %arg3: memref<1x4x32xf32, #tpu.memory_space<vmem>>, %arg4: memref<1x4x32xf32, #tpu.memory_space<vmem>>, %arg5: memref<8x4xf32, #tpu.memory_space<vmem>>, %arg6: memref<24x4xf32, #tpu.memory_space<vmem>>, %arg7: memref<8x32xf32, #tpu.memory_space<vmem>>, %arg8: memref<24x32xf32, #tpu.memory_space<vmem>>, %arg9: memref<1x16x32xf32, #tpu.memory_space<vmem>>, %arg10: memref<1x32xf32, #tpu.memory_space<vmem>>, %arg11: memref<1x32xf32, #tpu.memory_space<vmem>>, %arg12: memref<16x32xf32, #tpu.memory_space<vmem>>) attributes {dimension_semantics = [#tpu.dimension_semantics<parallel>, #tpu.dimension_semantics<parallel>, #tpu.dimension_semantics<arbitrary>], iteration_bounds = array<i64: 2, 1, 1>, scalar_prefetch = 0 : i64, scratch_operands = 3 : i64, tpu.core_type = #tpu.core_type<tc>, window_params = [{transform_indices = @transform_0, window_bounds = array<i64: 1, 4, 32>}, {transform_indices = @transform_1, window_bounds = array<i64: 1, 4, 32>}, {pipeline_mode = #tpu.pipeline_mode<synchronous>, transform_indices = @transform_2, window_bounds = array<i64: 8, 4>}, {pipeline_mode = #tpu.pipeline_mode<synchronous>, transform_indices = @transform_3, window_bounds = array<i64: 24, 4>}, {transform_indices = @transform_4, window_bounds = array<i64: 8, 32>}, {transform_indices = @transform_5, window_bounds = array<i64: 24, 32>}, {transform_indices = @transform_6, window_bounds = array<i64: 1, 16, 32>}]} {
    %c0_i32 = arith.constant 0 : i32
    %0 = arith.cmpi eq, %arg2, %c0_i32 : i32
    %1 = arith.extui %0 : i1 to i32
    %c0_i32_0 = arith.constant 0 : i32
    %2 = arith.cmpi ne, %1, %c0_i32_0 : i32
    scf.if %2 {
      %cst = arith.constant 0xFF800000 : f32
      %9 = vector.broadcast %cst : f32 to vector<1x32xf32>
      %c0 = arith.constant 0 : index
      %c0_3 = arith.constant 0 : index
      %10 = vector.load %arg10[%c0, %c0_3] : memref<1x32xf32, #tpu.memory_space<vmem>>, vector<1x32xf32>
      tpu.vector_store %arg10[%c0, %c0_3], %9 {strides = array<i32>} : memref<1x32xf32, #tpu.memory_space<vmem>>, vector<1x32xf32>,
      %cst_4 = arith.constant 0.000000e+00 : f32
      %11 = vector.broadcast %cst_4 : f32 to vector<1x32xf32>
      %c0_5 = arith.constant 0 : index
      %c0_6 = arith.constant 0 : index
      %12 = vector.load %arg11[%c0_5, %c0_6] : memref<1x32xf32, #tpu.memory_space<vmem>>, vector<1x32xf32>
      tpu.vector_store %arg11[%c0_5, %c0_6], %11 {strides = array<i32>} : memref<1x32xf32, #tpu.memory_space<vmem>>, vector<1x32xf32>,
      %cst_7 = arith.constant 0.000000e+00 : f32
      %13 = vector.broadcast %cst_7 : f32 to vector<16x32xf32>
      %c0_8 = arith.constant 0 : index
      %c0_9 = arith.constant 0 : index
      %14 = vector.load %arg12[%c0_8, %c0_9] : memref<16x32xf32, #tpu.memory_space<vmem>>, vector<16x32xf32>
      tpu.vector_store %arg12[%c0_8, %c0_9], %13 {strides = array<i32>} : memref<16x32xf32, #tpu.memory_space<vmem>>, vector<16x32xf32>,
    } else {
    }
    %3 = arith.cmpi slt, %arg2, %arg1 : i32
    %4 = arith.extui %3 : i1 to i32
    %c0_i32_1 = arith.constant 0 : i32
    %5 = arith.cmpi ne, %4, %c0_i32_1 : i32
    scf.if %5 {
      %c0 = arith.constant 0 : index
      %c0_3 = arith.constant 0 : index
      %9 = vector.load %arg5[%c0, %c0_3] : memref<8x4xf32, #tpu.memory_space<vmem>>, vector<8x4xf32>
      %c0_4 = arith.constant 0 : index
      %c0_5 = arith.constant 0 : index
      %c0_6 = arith.constant 0 : index
      %10 = vector.load %arg3[%c0_4, %c0_5, %c0_6] : memref<1x4x32xf32, #tpu.memory_space<vmem>>, vector<1x4x32xf32>
      %11 = vector.shape_cast %10 : vector<1x4x32xf32> to vector<4x32xf32>
      %cst = arith.constant dense<0.000000e+00> : vector<8x32xf32>
      %12 = tpu.matmul %9, %11, %cst {dimension_numbers = #tpu.dot_dimension_numbers<[1], [0], [0], [1], [0, 0, 1, 1], [], []>} : vector<8x4xf32>, vector<4x32xf32>, vector<8x32xf32> -> vector<8x32xf32>
      %c0_7 = arith.constant 0 : index
      %c0_8 = arith.constant 0 : index
      %13 = vector.load %arg7[%c0_7, %c0_8] : memref<8x32xf32, #tpu.memory_space<vmem>>, vector<8x32xf32>
      %14 = arith.addf %12, %13 : vector<8x32xf32>
      %c0_9 = arith.constant 0 : index
      %c0_10 = arith.constant 0 : index
      %15 = vector.load %arg6[%c0_9, %c0_10] : memref<24x4xf32, #tpu.memory_space<vmem>>, vector<24x4xf32>
      %c0_11 = arith.constant 0 : index
      %c0_12 = arith.constant 0 : index
      %c0_13 = arith.constant 0 : index
      %16 = vector.load %arg4[%c0_11, %c0_12, %c0_13] : memref<1x4x32xf32, #tpu.memory_space<vmem>>, vector<1x4x32xf32>
      %17 = vector.shape_cast %16 : vector<1x4x32xf32> to vector<4x32xf32>
      %cst_14 = arith.constant dense<0.000000e+00> : vector<24x32xf32>
      %18 = tpu.matmul %15, %17, %cst_14 {dimension_numbers = #tpu.dot_dimension_numbers<[1], [0], [0], [1], [0, 0, 1, 1], [], []>} : vector<24x4xf32>, vector<4x32xf32>, vector<24x32xf32> -> vector<24x32xf32>
      %c0_15 = arith.constant 0 : index
      %c0_16 = arith.constant 0 : index
      %19 = vector.load %arg8[%c0_15, %c0_16] : memref<24x32xf32, #tpu.memory_space<vmem>>, vector<24x32xf32>
      %20 = arith.addf %18, %19 : vector<24x32xf32>
      %21 = vector.extract_strided_slice %20 {offsets = [0, 0], sizes = [8, 32], strides = [1, 1]} : vector<24x32xf32> to vector<8x32xf32>
      %22 = vector.extract_strided_slice %20 {offsets = [8, 0], sizes = [16, 32], strides = [1, 1]} : vector<24x32xf32> to vector<16x32xf32>
      %cst_17 = arith.constant dense<0.000000e+00> : vector<32x32xf32>
      %23 = tpu.matmul %21, %14, %cst_17 {dimension_numbers = #tpu.dot_dimension_numbers<[0], [0], [1], [1], [0, 1, 1, 1], [], []>} : vector<8x32xf32>, vector<8x32xf32>, vector<32x32xf32> -> vector<32x32xf32>
      %cst_18 = arith.constant 5.000000e-01 : f32
      %24 = vector.broadcast %cst_18 : f32 to vector<32x32xf32>
      %25 = arith.mulf %23, %24 : vector<32x32xf32>
      %c0_19 = arith.constant 0 : index
      %c0_20 = arith.constant 0 : index
      %26 = vector.load %arg10[%c0_19, %c0_20] : memref<1x32xf32, #tpu.memory_space<vmem>>, vector<1x32xf32>
      %cst_21 = arith.constant dense<0xFF800000> : vector<32xf32>
      %27 = vector.multi_reduction <maximumf>, %25, %cst_21 [0] : vector<32x32xf32> to vector<32xf32>
      %28 = vector.shape_cast %27 : vector<32xf32> to vector<1x32xf32>
      %29 = arith.maximumf %26, %28 : vector<1x32xf32>
      %30 = arith.subf %26, %29 : vector<1x32xf32>
      %31 = math.exp %30 : vector<1x32xf32>
      %32 = vector.broadcast %29 : vector<1x32xf32> to vector<32x32xf32>
      %33 = arith.subf %25, %32 : vector<32x32xf32>
      %34 = math.exp %33 : vector<32x32xf32>
      %c0_22 = arith.constant 0 : index
      %c0_23 = arith.constant 0 : index
      %35 = vector.load %arg11[%c0_22, %c0_23] : memref<1x32xf32, #tpu.memory_space<vmem>>, vector<1x32xf32>
      %36 = arith.mulf %31, %35 : vector<1x32xf32>
      %cst_24 = arith.constant dense<0.000000e+00> : vector<32xf32>
      %37 = vector.multi_reduction <add>, %34, %cst_24 [0] : vector<32x32xf32> to vector<32xf32>
      %38 = vector.shape_cast %37 : vector<32xf32> to vector<1x32xf32>
      %39 = arith.addf %36, %38 : vector<1x32xf32>
      %c0_25 = arith.constant 0 : index
      %c0_26 = arith.constant 0 : index
      %40 = vector.load %arg11[%c0_25, %c0_26] : memref<1x32xf32, #tpu.memory_space<vmem>>, vector<1x32xf32>
      tpu.vector_store %arg11[%c0_25, %c0_26], %39 {strides = array<i32>} : memref<1x32xf32, #tpu.memory_space<vmem>>, vector<1x32xf32>,
      %c0_27 = arith.constant 0 : index
      %c0_28 = arith.constant 0 : index
      %41 = vector.load %arg12[%c0_27, %c0_28] : memref<16x32xf32, #tpu.memory_space<vmem>>, vector<16x32xf32>
      %42 = vector.broadcast %31 : vector<1x32xf32> to vector<16x32xf32>
      %43 = arith.mulf %42, %41 : vector<16x32xf32>
      %cst_29 = arith.constant dense<0.000000e+00> : vector<16x32xf32>
      %44 = tpu.matmul %22, %34, %cst_29 {dimension_numbers = #tpu.dot_dimension_numbers<[1], [0], [0], [1], [0, 0, 1, 1], [], []>} : vector<16x32xf32>, vector<32x32xf32>, vector<16x32xf32> -> vector<16x32xf32>
      %45 = arith.addf %43, %44 : vector<16x32xf32>
      %c0_30 = arith.constant 0 : index
      %c0_31 = arith.constant 0 : index
      %46 = vector.load %arg12[%c0_30, %c0_31] : memref<16x32xf32, #tpu.memory_space<vmem>>, vector<16x32xf32>
      tpu.vector_store %arg12[%c0_30, %c0_31], %45 {strides = array<i32>} : memref<16x32xf32, #tpu.memory_space<vmem>>, vector<16x32xf32>,
      %c0_32 = arith.constant 0 : index
      %c0_33 = arith.constant 0 : index
      %47 = vector.load %arg10[%c0_32, %c0_33] : memref<1x32xf32, #tpu.memory_space<vmem>>, vector<1x32xf32>
      tpu.vector_store %arg10[%c0_32, %c0_33], %29 {strides = array<i32>} : memref<1x32xf32, #tpu.memory_space<vmem>>, vector<1x32xf32>,
    } else {
    }
    %6 = arith.cmpi eq, %arg2, %arg1 : i32
    %7 = arith.extui %6 : i1 to i32
    %c0_i32_2 = arith.constant 0 : i32
    %8 = arith.cmpi ne, %7, %c0_i32_2 : i32
    scf.if %8 {
      %c0 = arith.constant 0 : index
      %c0_3 = arith.constant 0 : index
      %9 = vector.load %arg5[%c0, %c0_3] : memref<8x4xf32, #tpu.memory_space<vmem>>, vector<8x4xf32>
      %c0_4 = arith.constant 0 : index
      %c0_5 = arith.constant 0 : index
      %c0_6 = arith.constant 0 : index
      %10 = vector.load %arg3[%c0_4, %c0_5, %c0_6] : memref<1x4x32xf32, #tpu.memory_space<vmem>>, vector<1x4x32xf32>
      %11 = vector.shape_cast %10 : vector<1x4x32xf32> to vector<4x32xf32>
      %cst = arith.constant dense<0.000000e+00> : vector<8x32xf32>
      %12 = tpu.matmul %9, %11, %cst {dimension_numbers = #tpu.dot_dimension_numbers<[1], [0], [0], [1], [0, 0, 1, 1], [], []>} : vector<8x4xf32>, vector<4x32xf32>, vector<8x32xf32> -> vector<8x32xf32>
      %c0_7 = arith.constant 0 : index
      %c0_8 = arith.constant 0 : index
      %13 = vector.load %arg7[%c0_7, %c0_8] : memref<8x32xf32, #tpu.memory_space<vmem>>, vector<8x32xf32>
      %14 = arith.addf %12, %13 : vector<8x32xf32>
      %c0_9 = arith.constant 0 : index
      %c0_10 = arith.constant 0 : index
      %15 = vector.load %arg6[%c0_9, %c0_10] : memref<24x4xf32, #tpu.memory_space<vmem>>, vector<24x4xf32>
      %c0_11 = arith.constant 0 : index
      %c0_12 = arith.constant 0 : index
      %c0_13 = arith.constant 0 : index
      %16 = vector.load %arg4[%c0_11, %c0_12, %c0_13] : memref<1x4x32xf32, #tpu.memory_space<vmem>>, vector<1x4x32xf32>
      %17 = vector.shape_cast %16 : vector<1x4x32xf32> to vector<4x32xf32>
      %cst_14 = arith.constant dense<0.000000e+00> : vector<24x32xf32>
      %18 = tpu.matmul %15, %17, %cst_14 {dimension_numbers = #tpu.dot_dimension_numbers<[1], [0], [0], [1], [0, 0, 1, 1], [], []>} : vector<24x4xf32>, vector<4x32xf32>, vector<24x32xf32> -> vector<24x32xf32>
      %c0_15 = arith.constant 0 : index
      %c0_16 = arith.constant 0 : index
      %19 = vector.load %arg8[%c0_15, %c0_16] : memref<24x32xf32, #tpu.memory_space<vmem>>, vector<24x32xf32>
      %20 = arith.addf %18, %19 : vector<24x32xf32>
      %21 = vector.extract_strided_slice %20 {offsets = [0, 0], sizes = [8, 32], strides = [1, 1]} : vector<24x32xf32> to vector<8x32xf32>
      %22 = vector.extract_strided_slice %20 {offsets = [8, 0], sizes = [16, 32], strides = [1, 1]} : vector<24x32xf32> to vector<16x32xf32>
      %cst_17 = arith.constant dense<0.000000e+00> : vector<32x32xf32>
      %23 = tpu.matmul %21, %14, %cst_17 {dimension_numbers = #tpu.dot_dimension_numbers<[0], [0], [1], [1], [0, 1, 1, 1], [], []>} : vector<8x32xf32>, vector<8x32xf32>, vector<32x32xf32> -> vector<32x32xf32>
      %cst_18 = arith.constant 5.000000e-01 : f32
      %24 = vector.broadcast %cst_18 : f32 to vector<32x32xf32>
      %25 = arith.mulf %23, %24 : vector<32x32xf32>
      %c32_i32 = arith.constant 32 : i32
      %26 = arith.muli %arg2, %c32_i32 : i32
      %27 = tpu.iota {dimensions = array<i32: 0>} : vector<32x32xi32>
      %28 = vector.broadcast %26 : i32 to vector<32x32xi32>
      %29 = arith.addi %28, %27 : vector<32x32xi32>
      %c32_i32_19 = arith.constant 32 : i32
      %30 = arith.muli %arg1, %c32_i32_19 : i32
      %31 = tpu.iota {dimensions = array<i32: 1>} : vector<32x32xi32>
      %32 = vector.broadcast %30 : i32 to vector<32x32xi32>
      %33 = arith.addi %32, %31 : vector<32x32xi32>
      %34 = arith.cmpi slt, %29, %33 : vector<32x32xi32>
      %cst_20 = arith.constant -1.000000e+30 : f32
      %35 = vector.broadcast %cst_20 : f32 to vector<32x32xf32>
      %36 = arith.select %34, %25, %35 : vector<32x32xi1>, vector<32x32xf32>
      %c0_21 = arith.constant 0 : index
      %c0_22 = arith.constant 0 : index
      %37 = vector.load %arg10[%c0_21, %c0_22] : memref<1x32xf32, #tpu.memory_space<vmem>>, vector<1x32xf32>
      %cst_23 = arith.constant dense<0xFF800000> : vector<32xf32>
      %38 = vector.multi_reduction <maximumf>, %36, %cst_23 [0] : vector<32x32xf32> to vector<32xf32>
      %39 = vector.shape_cast %38 : vector<32xf32> to vector<1x32xf32>
      %40 = arith.maximumf %37, %39 : vector<1x32xf32>
      %41 = arith.subf %37, %40 : vector<1x32xf32>
      %42 = math.exp %41 : vector<1x32xf32>
      %43 = vector.broadcast %40 : vector<1x32xf32> to vector<32x32xf32>
      %44 = arith.subf %36, %43 : vector<32x32xf32>
      %45 = math.exp %44 : vector<32x32xf32>
      %cst_24 = arith.constant 0.000000e+00 : f32
      %46 = vector.broadcast %cst_24 : f32 to vector<32x32xf32>
      %47 = arith.select %34, %45, %46 : vector<32x32xi1>, vector<32x32xf32>
      %c0_25 = arith.constant 0 : index
      %c0_26 = arith.constant 0 : index
      %48 = vector.load %arg11[%c0_25, %c0_26] : memref<1x32xf32, #tpu.memory_space<vmem>>, vector<1x32xf32>
      %49 = arith.mulf %42, %48 : vector<1x32xf32>
      %cst_27 = arith.constant dense<0.000000e+00> : vector<32xf32>
      %50 = vector.multi_reduction <add>, %47, %cst_27 [0] : vector<32x32xf32> to vector<32xf32>
      %51 = vector.shape_cast %50 : vector<32xf32> to vector<1x32xf32>
      %52 = arith.addf %49, %51 : vector<1x32xf32>
      %c0_28 = arith.constant 0 : index
      %c0_29 = arith.constant 0 : index
      %53 = vector.load %arg11[%c0_28, %c0_29] : memref<1x32xf32, #tpu.memory_space<vmem>>, vector<1x32xf32>
      tpu.vector_store %arg11[%c0_28, %c0_29], %52 {strides = array<i32>} : memref<1x32xf32, #tpu.memory_space<vmem>>, vector<1x32xf32>,
      %c0_30 = arith.constant 0 : index
      %c0_31 = arith.constant 0 : index
      %54 = vector.load %arg12[%c0_30, %c0_31] : memref<16x32xf32, #tpu.memory_space<vmem>>, vector<16x32xf32>
      %55 = vector.broadcast %42 : vector<1x32xf32> to vector<16x32xf32>
      %56 = arith.mulf %55, %54 : vector<16x32xf32>
      %cst_32 = arith.constant dense<0.000000e+00> : vector<16x32xf32>
      %57 = tpu.matmul %22, %47, %cst_32 {dimension_numbers = #tpu.dot_dimension_numbers<[1], [0], [0], [1], [0, 0, 1, 1], [], []>} : vector<16x32xf32>, vector<32x32xf32>, vector<16x32xf32> -> vector<16x32xf32>
      %58 = arith.addf %56, %57 : vector<16x32xf32>
      %c0_33 = arith.constant 0 : index
      %c0_34 = arith.constant 0 : index
      %59 = vector.load %arg12[%c0_33, %c0_34] : memref<16x32xf32, #tpu.memory_space<vmem>>, vector<16x32xf32>
      tpu.vector_store %arg12[%c0_33, %c0_34], %58 {strides = array<i32>} : memref<16x32xf32, #tpu.memory_space<vmem>>, vector<16x32xf32>,
      %c0_35 = arith.constant 0 : index
      %c0_36 = arith.constant 0 : index
      %60 = vector.load %arg10[%c0_35, %c0_36] : memref<1x32xf32, #tpu.memory_space<vmem>>, vector<1x32xf32>
      tpu.vector_store %arg10[%c0_35, %c0_36], %40 {strides = array<i32>} : memref<1x32xf32, #tpu.memory_space<vmem>>, vector<1x32xf32>,
      %c0_37 = arith.constant 0 : index
      %c0_38 = arith.constant 0 : index
      %61 = vector.load %arg11[%c0_37, %c0_38] : memref<1x32xf32, #tpu.memory_space<vmem>>, vector<1x32xf32>
      %cst_39 = arith.constant 0.000000e+00 : f32
      %62 = vector.broadcast %cst_39 : f32 to vector<1x32xf32>
      %63 = arith.cmpf ogt, %61, %62 : vector<1x32xf32>
      %64 = tpu.reciprocal %61 {approx = true} : vector<1x32xf32> -> vector<1x32xf32>
      %cst_40 = arith.constant 0.000000e+00 : f32
      %65 = vector.broadcast %cst_40 : f32 to vector<1x32xf32>
      %66 = arith.select %63, %64, %65 : vector<1x32xi1>, vector<1x32xf32>
      %c0_41 = arith.constant 0 : index
      %c0_42 = arith.constant 0 : index
      %67 = vector.load %arg12[%c0_41, %c0_42] : memref<16x32xf32, #tpu.memory_space<vmem>>, vector<16x32xf32>
      %68 = vector.broadcast %66 : vector<1x32xf32> to vector<16x32xf32>
      %69 = arith.mulf %67, %68 : vector<16x32xf32>
      %c0_43 = arith.constant 0 : index
      %c0_44 = arith.constant 0 : index
      %c0_45 = arith.constant 0 : index
      %70 = vector.load %arg9[%c0_43, %c0_44, %c0_45] : memref<1x16x32xf32, #tpu.memory_space<vmem>>, vector<1x16x32xf32>
      %71 = vector.shape_cast %70 : vector<1x16x32xf32> to vector<16x32xf32>
      %72 = vector.shape_cast %69 : vector<16x32xf32> to vector<1x16x32xf32>
      tpu.vector_store %arg9[%c0_43, %c0_44, %c0_45], %72 {strides = array<i32>} : memref<1x16x32xf32, #tpu.memory_space<vmem>>, vector<1x16x32xf32>,
    } else {
    }
    return
  }
  func.func @transform_0(%arg0: i32, %arg1: i32, %arg2: i32) -> (i32, i32, i32) {
    %c0_i32 = arith.constant 0 : i32
    %c0_i32_0 = arith.constant 0 : i32
    return %arg0, %c0_i32, %arg1 : i32, i32, i32
  }
  func.func @transform_1(%arg0: i32, %arg1: i32, %arg2: i32) -> (i32, i32, i32) {
    %c0_i32 = arith.constant 0 : i32
    %c0_i32_0 = arith.constant 0 : i32
    return %arg0, %c0_i32, %arg2 : i32, i32, i32
  }
  func.func @transform_2(%arg0: i32, %arg1: i32, %arg2: i32) -> (i32, i32) {
    %c0_i32 = arith.constant 0 : i32
    %c0_i32_0 = arith.constant 0 : i32
    %c0_i32_1 = arith.constant 0 : i32
    return %c0_i32, %c0_i32_0 : i32, i32
  }
  func.func @transform_3(%arg0: i32, %arg1: i32, %arg2: i32) -> (i32, i32) {
    %c0_i32 = arith.constant 0 : i32
    %c0_i32_0 = arith.constant 0 : i32
    %c0_i32_1 = arith.constant 0 : i32
    return %c0_i32, %c0_i32_0 : i32, i32
  }
  func.func @transform_4(%arg0: i32, %arg1: i32, %arg2: i32) -> (i32, i32) {
    %c0_i32 = arith.constant 0 : i32
    %c0_i32_0 = arith.constant 0 : i32
    return %c0_i32, %arg1 : i32, i32
  }
  func.func @transform_5(%arg0: i32, %arg1: i32, %arg2: i32) -> (i32, i32) {
    %c0_i32 = arith.constant 0 : i32
    %c0_i32_0 = arith.constant 0 : i32
    return %c0_i32, %arg2 : i32, i32
  }
  func.func @transform_6(%arg0: i32, %arg1: i32, %arg2: i32) -> (i32, i32, i32) {
    %c0_i32 = arith.constant 0 : i32
    %c0_i32_0 = arith.constant 0 : i32
    return %arg0, %c0_i32, %arg1 : i32, i32, i32
  }
}

</mosaic_0001>

<llo_original>
// kernel: tpu_custom_call.1
$region0: #{tpu_custom_call.1}
  #allocation0 [shape = 'u32[]', space=smem, size = 0x4, offset = 0x4, fixed_abs, tag = 'smem constant byte address 0x4 - core index']
  #allocation1 [shape = 'u32[72,128]{1,0:T(1,128)}', space=vmem, size = 0x9000, scoped, tag = 'internal scratch']
  #allocation2 [shape = 'f32[1,32]{1,0:T(1,128)}', space=vmem, size = 0x200, scoped, tag = 'scratch operand']
  #allocation3 [shape = 'f32[1,32]{1,0:T(1,128)}', space=vmem, size = 0x200, scoped, tag = 'scratch operand']
  #allocation4 [shape = 'f32[16,32]{1,0:T(8,128)}', space=vmem, size = 0x2000, scoped, tag = 'scratch operand']
  %s0 = inlined_call_operand.vmem [shape: f32[2,4,32], index: 0, kind: input, shape index: {}]
  %s1 = inlined_call_operand.hbm [shape: f32[2,4,32], index: 1, kind: input, shape index: {}]
  %s2 = inlined_call_operand.vmem [shape: f32[8,4], index: 2, kind: input, shape index: {}]
  %s3 = inlined_call_operand.vmem [shape: f32[24,4], index: 3, kind: input, shape index: {}]
  %s4 = inlined_call_operand.hbm [shape: f32[8,32], index: 4, kind: input, shape index: {}]
  %s5 = inlined_call_operand.vmem [shape: f32[24,32], index: 5, kind: input, shape index: {}]
  %s6 = inlined_call_operand.hbm [shape: f32[2,16,32], index: 6, kind: output, shape index: {}]
  %s7 = sld [smem:[#allocation0]]
  $region77: #{tpu_custom_call.1} parent=0
    _
  %s9 = ssub.s32 1, %s7
  %s10 = scalar_select 0, %s9, %s7
  $region1: #{tpu_custom_call.1} parent=0
    #allocation5 [shape = 'u8[4096]{0}', space=vmem, size = 0x1000, scoped, tag = 'input window, operand 1']
    #allocation6 [shape = 's32[2]{0}', space=sflag, size = 0x8, scoped, tag = 'scoped memory for tpu_custom_call.1']
    #allocation7 [shape = 's32[2]{0}', space=sflag, size = 0x8, scoped, tag = 'scoped memory for tpu_custom_call.1']
    #allocation8 [shape = 'u8[4096]{0}', space=vmem, size = 0x1000, scoped, tag = 'input window, operand 4, single buffered']
    #allocation9 [shape = 's32[1]{0}', space=sflag, size = 0x4, scoped, tag = 'scoped memory for tpu_custom_call.1']
    #allocation10 [shape = 'u8[16384]{0}', space=vmem, size = 0x4000, scoped, tag = 'output window, operand 0']
    %11 = vsyncpa [#allocation6], 0
    %s12 = scalar_lea.sflag [#allocation6], 1
    %13 = vsyncpa %s12, 0
    %14 = vsyncpa [#allocation9], 0
    %15 = vsyncpa [#allocation7], 0
    %s16 = scalar_lea.sflag [#allocation7], 1
    %17 = vsyncpa %s16, 0
    loop: start=0, step=1, limit=4
    $region2: #{tpu_custom_call.1} parent=1 // loop_pre_header
      _
    $region3: #{tpu_custom_call.1} parent=1 // loop_header
      %s19 = sphi 0, %s23
      %p20 = scmp.ge.s32.totalorder %s19, 4
      %s26 = sphi 0, %s45
      %s27 = sphi 0, %s41
      %s28 = sphi 0, %s37
      %s29 = sphi 0, %s26
      %s30 = sphi 0, %s27
      %s31 = sphi 0, %s28
      %s32 = sphi 0, %s29
      %s33 = sphi 0, %s30
      %s34 = sphi 0, %s31
      %s50 = sphi 0, %s52
      %s53 = sphi 0, %s50
      %s54 = sphi 0, %s53
      %s70 = sphi 0, %s54
      %s78 = sphi 0, %s80
      %s81 = sphi 0, %s78
      %s82 = sphi 0, %s81
      %s98 = sphi 0, %s82
      %s102 = sphi 0, %s102
      %s104 = sphi 0, %s102
      %s105 = sphi 0, %s104
      %s119 = sphi 0, %s105
      %s123 = sphi 0, %s123
      %s125 = sphi 0, %s123
      %s126 = sphi 0, %s125
      %s140 = sphi 0, %s126
      %s146 = sphi 0, %s148
      %s149 = sphi 0, %s146
      %s150 = sphi 0, %s149
      %s166 = sphi 0, %s150
      %s172 = sphi 0, %s174
      %s175 = sphi 0, %s172
      %s176 = sphi 0, %s175
      %s192 = sphi 0, %s176
      %s200 = sphi 0, %s202
      %s203 = sphi 0, %s200
      %s204 = sphi 0, %s203
      %s220 = sphi 0, %s204
    $region4: #{tpu_custom_call.1} parent=1 // loop_header_branch
      %22 = sbr.rel (%p20) target = $region8
    $region5: #{tpu_custom_call.1} parent=1 // loop_body
      %s24 = ssub.s32 %s19, 1
      %s25 = ssub.s32 %s19, 2
      %s35 = sadd.s32 1, %s28
      %p36 = scmp.ge.s32.totalorder %s35, 1
      %s37 = scalar_select %p36, 0, %s35
      %s38 = sadd.s32 1, %s27
      %s39 = scalar_select %p36, %s38, %s27
      %p40 = scmp.ge.s32.totalorder %s39, 1
      %s41 = scalar_select %p40, 0, %s39
      %s42 = sadd.s32 1, %s26
      %s43 = scalar_select %p40, %s42, %s26
      %p44 = scmp.ge.s32.totalorder %s43, 2
      %s45 = scalar_select %p44, 0, %s43
      %s46 = ssub.s32 %s26, %s45
      %s47 = ssub.s32 %s27, %s41
      %s48 = sor.u32 %s46, %s47
      %p49 = scmp.eq.s32.totalorder %s48, 0
      %s51 = sadd.s32 %s50, 1
      %s52 = scalar_select %p49, %s50, %s51
      %p55 = pneg %p49
      %p56 = scmp.eq.s32.totalorder %s19, 1
      %p57 = por %p55, %p56
      %p58 = scmp.ne.s32.totalorder %s50, %s53
      %p59 = scmp.eq.s32.totalorder %s19, 0
      %p60 = por %p58, %p59
      %p61 = scmp.ne.s32.totalorder %s50, %s53
      %p62 = scmp.eq.s32.totalorder %s24, 1
      %p63 = por %p61, %p62
      %p64 = scmp.ne.s32.totalorder %s53, %s54
      %p65 = scmp.eq.s32.totalorder %s24, 0
      %p66 = por %p64, %p65
      %p67 = scmp.ne.s32.totalorder %s53, %s54
      %p68 = scmp.eq.s32.totalorder %s25, 1
      %p69 = por %p67, %p68
      %p71 = scmp.ne.s32.totalorder %s54, %s70
      %p72 = scmp.eq.s32.totalorder %s25, 0
      %p73 = por %p71, %p72
      %s74 = ssub.s32 %s26, %s45
      %s75 = ssub.s32 %s28, %s37
      %s76 = sor.u32 %s74, %s75
      %p77 = scmp.eq.s32.totalorder %s76, 0
      %s79 = sadd.s32 %s78, 1
      %s80 = scalar_select %p77, %s78, %s79
      %p83 = pneg %p77
      %p84 = scmp.eq.s32.totalorder %s19, 1
      %p85 = por %p83, %p84
      %p86 = scmp.ne.s32.totalorder %s78, %s81
      %p87 = scmp.eq.s32.totalorder %s19, 0
      %p88 = por %p86, %p87
      %p89 = scmp.ne.s32.totalorder %s78, %s81
      %p90 = scmp.eq.s32.totalorder %s24, 1
      %p91 = por %p89, %p90
      %p92 = scmp.ne.s32.totalorder %s81, %s82
      %p93 = scmp.eq.s32.totalorder %s24, 0
      %p94 = por %p92, %p93
      %p95 = scmp.ne.s32.totalorder %s81, %s82
      %p96 = scmp.eq.s32.totalorder %s25, 1
      %p97 = por %p95, %p96
      %p99 = scmp.ne.s32.totalorder %s82, %s98
      %p100 = scmp.eq.s32.totalorder %s25, 0
      %p101 = por %p99, %p100
      %s103 = sadd.s32 %s102, 1
      %p106 = scmp.eq.s32.totalorder %s19, 1
      %p107 = scmp.ne.s32.totalorder %s102, %s104
      %p108 = scmp.eq.s32.totalorder %s19, 0
      %p109 = por %p107, %p108
      %p110 = scmp.ne.s32.totalorder %s102, %s104
      %p111 = scmp.eq.s32.totalorder %s24, 1
      %p112 = por %p110, %p111
      %p113 = scmp.ne.s32.totalorder %s104, %s105
      %p114 = scmp.eq.s32.totalorder %s24, 0
      %p115 = por %p113, %p114
      %p116 = scmp.ne.s32.totalorder %s104, %s105
      %p117 = scmp.eq.s32.totalorder %s25, 1
      %p118 = por %p116, %p117
      %p120 = scmp.ne.s32.totalorder %s105, %s119
      %p121 = scmp.eq.s32.totalorder %s25, 0
      %p122 = por %p120, %p121
      %s124 = sadd.s32 %s123, 1
      %p127 = scmp.eq.s32.totalorder %s19, 1
      %p128 = scmp.ne.s32.totalorder %s123, %s125
      %p129 = scmp.eq.s32.totalorder %s19, 0
      %p130 = por %p128, %p129
      %p131 = scmp.ne.s32.totalorder %s123, %s125
      %p132 = scmp.eq.s32.totalorder %s24, 1
      %p133 = por %p131, %p132
      %p134 = scmp.ne.s32.totalorder %s125, %s126
      %p135 = scmp.eq.s32.totalorder %s24, 0
      %p136 = por %p134, %p135
      %p137 = scmp.ne.s32.totalorder %s125, %s126
      %p138 = scmp.eq.s32.totalorder %s25, 1
      %p139 = por %p137, %p138
      %p141 = scmp.ne.s32.totalorder %s126, %s140
      %p142 = scmp.eq.s32.totalorder %s25, 0
      %p143 = por %p141, %p142
      %s144 = ssub.s32 %s27, %s41
      %p145 = scmp.eq.s32.totalorder %s144, 0
      %s147 = sadd.s32 %s146, 1
      %s148 = scalar_select %p145, %s146, %s147
      %p151 = pneg %p145
      %p152 = scmp.eq.s32.totalorder %s19, 1
      %p153 = por %p151, %p152
      %p154 = scmp.ne.s32.totalorder %s146, %s149
      %p155 = scmp.eq.s32.totalorder %s19, 0
      %p156 = por %p154, %p155
      %p157 = scmp.ne.s32.totalorder %s146, %s149
      %p158 = scmp.eq.s32.totalorder %s24, 1
      %p159 = por %p157, %p158
      %p160 = scmp.ne.s32.totalorder %s149, %s150
      %p161 = scmp.eq.s32.totalorder %s24, 0
      %p162 = por %p160, %p161
      %p163 = scmp.ne.s32.totalorder %s149, %s150
      %p164 = scmp.eq.s32.totalorder %s25, 1
      %p165 = por %p163, %p164
      %p167 = scmp.ne.s32.totalorder %s150, %s166
      %p168 = scmp.eq.s32.totalorder %s25, 0
      %p169 = por %p167, %p168
      %s170 = ssub.s32 %s28, %s37
      %p171 = scmp.eq.s32.totalorder %s170, 0
      %s173 = sadd.s32 %s172, 1
      %s174 = scalar_select %p171, %s172, %s173
      %p177 = pneg %p171
      %p178 = scmp.eq.s32.totalorder %s19, 1
      %p179 = por %p177, %p178
      %p180 = scmp.ne.s32.totalorder %s172, %s175
      %p181 = scmp.eq.s32.totalorder %s19, 0
      %p182 = por %p180, %p181
      %p183 = scmp.ne.s32.totalorder %s172, %s175
      %p184 = scmp.eq.s32.totalorder %s24, 1
      %p185 = por %p183, %p184
      %p186 = scmp.ne.s32.totalorder %s175, %s176
      %p187 = scmp.eq.s32.totalorder %s24, 0
      %p188 = por %p186, %p187
      %p189 = scmp.ne.s32.totalorder %s175, %s176
      %p190 = scmp.eq.s32.totalorder %s25, 1
      %p191 = por %p189, %p190
      %p193 = scmp.ne.s32.totalorder %s176, %s192
      %p194 = scmp.eq.s32.totalorder %s25, 0
      %p195 = por %p193, %p194
      %s196 = ssub.s32 %s26, %s45
      %s197 = ssub.s32 %s27, %s41
      %s198 = sor.u32 %s196, %s197
      %p199 = scmp.eq.s32.totalorder %s198, 0
      %s201 = sadd.s32 %s200, 1
      %s202 = scalar_select %p199, %s200, %s201
      %p205 = pneg %p199
      %p206 = scmp.eq.s32.totalorder %s19, 1
      %p207 = por %p205, %p206
      %p208 = scmp.ne.s32.totalorder %s200, %s203
      %p209 = scmp.eq.s32.totalorder %s19, 0
      %p210 = por %p208, %p209
      %p211 = scmp.ne.s32.totalorder %s200, %s203
      %p212 = scmp.eq.s32.totalorder %s24, 1
      %p213 = por %p211, %p212
      %p214 = scmp.ne.s32.totalorder %s203, %s204
      %p215 = scmp.eq.s32.totalorder %s24, 0
      %p216 = por %p214, %p215
      %p217 = scmp.ne.s32.totalorder %s203, %s204
      %p218 = scmp.eq.s32.totalorder %s25, 1
      %p219 = por %p217, %p218
      %p221 = scmp.ne.s32.totalorder %s204, %s220
      %p222 = scmp.eq.s32.totalorder %s25, 0
      %p223 = por %p221, %p222
      %p224 = scmp.le.s32.totalorder 1, %s19
      %p225 = scmp.lt.s32.totalorder %s19, 3
      %p226 = pnand %p224, %p225
      %p227 = pneg %p226
      // Predicated region
      $region9: #{tpu_custom_call.1} parent=5 // pred_check
        _
      $region10: #{tpu_custom_call.1} parent=5 // pred_check_branch
        %229 = sbr.rel (%p226) target = $region12
      $region11: #{tpu_custom_call.1} parent=5 // pred_region
        %s230 = ssub.s32 %s19, 1
        // Predicated region
        $region13: #{tpu_custom_call.1} parent=11 // pred_check
          %p231 = pneg %p115
        $region14: #{tpu_custom_call.1} parent=11 // pred_check_branch
          %233 = sbr.rel (%p231) target = $region16
        $region15: #{tpu_custom_call.1} parent=11 // pred_region
          _
        $region16: #{tpu_custom_call.1} parent=11 // pred_fallthru
          _
        // Predicated region
        $region17: #{tpu_custom_call.1} parent=11 // pred_check
          %p234 = pneg %p136
        $region18: #{tpu_custom_call.1} parent=11 // pred_check_branch
          %236 = sbr.rel (%p234) target = $region20
        $region19: #{tpu_custom_call.1} parent=11 // pred_region
          _
        $region20: #{tpu_custom_call.1} parent=11 // pred_fallthru
          _
        // Predicated region
        $region21: #{tpu_custom_call.1} parent=11 // pred_check
          %p237 = pneg %p162
        $region22: #{tpu_custom_call.1} parent=11 // pred_check_branch
          %239 = sbr.rel (%p237) target = $region24
        $region23: #{tpu_custom_call.1} parent=11 // pred_region
          %241 = vsyncadd [#allocation9], 0
          %s242 = smul.addr %s30, 8
          %s243 = scalar_lea.hbm %s4, %s242
          %s245 = sshll.u32 %s243, 4
          %s246 = int_to_ptr.hbm [resolvable:$true] %s245
          %s247 = sshll.u32 [#allocation8], 4
          %s248 = int_to_ptr.vmem [resolvable:$true] %s247
          %250 = dma.hbm_to_vmem [thread:$0]  %s246, 128, %s248, [#allocation9]
        $region24: #{tpu_custom_call.1} parent=11 // pred_fallthru
          _
        // Predicated region
        $region25: #{tpu_custom_call.1} parent=11 // pred_check
          %p251 = pneg %p188
        $region26: #{tpu_custom_call.1} parent=11 // pred_check_branch
          %253 = sbr.rel (%p251) target = $region28
        $region27: #{tpu_custom_call.1} parent=11 // pred_region
          %p254 = scmp.lt.s32.totalorder %s31, 0
          %s255 = scalar_select %p254, %s31, 0
          %s256 = smul.addr %s255, 8
          %s257 = scalar_lea.vmem %s5, %s256
        $region28: #{tpu_custom_call.1} parent=11 // pred_fallthru
          _
      $region12: #{tpu_custom_call.1} parent=5 // pred_fallthru
        _
      %p258 = scmp.lt.s32.totalorder %s19, 2
      // Predicated region
      $region29: #{tpu_custom_call.1} parent=5 // pred_check
        %p259 = pneg %p258
      $region30: #{tpu_custom_call.1} parent=5 // pred_check_branch
        %261 = sbr.rel (%p259) target = $region32
      $region31: #{tpu_custom_call.1} parent=5 // pred_region
        // Predicated region
        $region33: #{tpu_custom_call.1} parent=31 // pred_check
          %p262 = pneg %p60
        $region34: #{tpu_custom_call.1} parent=31 // pred_check_branch
          %264 = sbr.rel (%p262) target = $region36
        $region35: #{tpu_custom_call.1} parent=31 // pred_region
          %p265 = scmp.lt.s32.totalorder %s26, 1
          %s266 = scalar_select %p265, %s26, 1
          %p267 = scmp.lt.s32.totalorder %s27, 0
          %s268 = scalar_select %p267, %s27, 0
          %s269 = sadd.s32 %s268, %s266
          %s270 = smul.addr %s269, 4
          %s271 = scalar_lea.vmem %s0, %s270
        $region36: #{tpu_custom_call.1} parent=31 // pred_fallthru
          _
        // Predicated region
        $region37: #{tpu_custom_call.1} parent=31 // pred_check
          %p272 = pneg %p88
        $region38: #{tpu_custom_call.1} parent=31 // pred_check_branch
          %274 = sbr.rel (%p272) target = $region40
        $region39: #{tpu_custom_call.1} parent=31 // pred_region
          %s275 = sand.u32 %s78, 1
          %s276 = scalar_lea.sflag [#allocation6], %s275
          %s277 = sand.u32 %s78, 1
          %s278 = smul.addr %s277, 4
          %s279 = scalar_lea.vmem [#allocation5], %s278
          %281 = vsyncadd %s276, 0
          %s282 = sadd.s32 %s28, %s26
          %s283 = smul.addr %s282, 4
          %s284 = scalar_lea.hbm %s1, %s283
          %s286 = sshll.u32 %s284, 4
          %s287 = int_to_ptr.hbm [resolvable:$true] %s286
          %s288 = sshll.u32 %s279, 4
          %s289 = int_to_ptr.vmem [resolvable:$true] %s288
          %291 = dma.hbm_to_vmem [thread:$0]  %s287, 64, %s289, %s276
        $region40: #{tpu_custom_call.1} parent=31 // pred_fallthru
          _
      $region32: #{tpu_custom_call.1} parent=5 // pred_fallthru
        _
      %p292 = scmp.le.s32.totalorder 1, %s19
      %p293 = scmp.lt.s32.totalorder %s19, 3
      %p294 = pnand %p292, %p293
      %p295 = pneg %p294
      // Predicated region
      $region41: #{tpu_custom_call.1} parent=5 // pred_check
        _
      $region42: #{tpu_custom_call.1} parent=5 // pred_check_branch
        %297 = sbr.rel (%p294) target = $region44
      $region43: #{tpu_custom_call.1} parent=5 // pred_region
        %s298 = ssub.s32 %s19, 1
        %s299 = sand.u32 %s81, 1
        %s300 = scalar_lea.sflag [#allocation6], %s299
        %s301 = sand.u32 %s81, 1
        %s302 = smul.addr %s301, 4
        %s303 = scalar_lea.vmem [#allocation5], %s302
        // Predicated region
        $region45: #{tpu_custom_call.1} parent=43 // pred_check
          %p304 = pneg %p94
        $region46: #{tpu_custom_call.1} parent=43 // pred_check_branch
          %306 = sbr.rel (%p304) target = $region48
        $region47: #{tpu_custom_call.1} parent=43 // pred_region
          %308 = dma.done %s300, 64
        $region48: #{tpu_custom_call.1} parent=43 // pred_fallthru
          _
        // Predicated region
        $region49: #{tpu_custom_call.1} parent=43 // pred_check
          %p309 = pneg %p162
        $region50: #{tpu_custom_call.1} parent=43 // pred_check_branch
          %311 = sbr.rel (%p309) target = $region52
        $region51: #{tpu_custom_call.1} parent=43 // pred_region
          %313 = dma.done [#allocation9], 128
        $region52: #{tpu_custom_call.1} parent=43 // pred_fallthru
          _
        %p314 = scmp.lt.s32.totalorder %s29, 1
        %s315 = scalar_select %p314, %s29, 1
        %p316 = scmp.lt.s32.totalorder %s30, 0
        %s317 = scalar_select %p316, %s30, 0
        %s318 = sadd.s32 %s317, %s315
        %s319 = smul.addr %s318, 4
        %s320 = scalar_lea.vmem %s0, %s319
        %p321 = pneg %p66
        %p322 = pneg %p63
        %s323 = sand.u32 %s81, 1
        %s324 = scalar_lea.sflag [#allocation6], %s323
        %s325 = sand.u32 %s81, 1
        %s326 = smul.addr %s325, 4
        %s327 = scalar_lea.vmem [#allocation5], %s326
        %p328 = pneg %p94
        %p329 = pneg %p91
        %p330 = pneg %p115
        %p331 = pneg %p112
        %p332 = pneg %p136
        %p333 = pneg %p133
        %p334 = pneg %p162
        %p335 = pneg %p159
        %p336 = scmp.lt.s32.totalorder %s31, 0
        %s337 = scalar_select %p336, %s31, 0
        %s338 = smul.addr %s337, 8
        %s339 = scalar_lea.vmem %s5, %s338
        %p340 = pneg %p188
        %p341 = pneg %p185
        %p342 = pneg %p216
        %p343 = pneg %p213
        %s344 = sand.u32 %s203, 1
        %s345 = scalar_lea.sflag [#allocation7], %s344
        %s346 = sand.u32 %s203, 1
        %s347 = smul.addr %s346, 16
        %s348 = scalar_lea.vmem [#allocation10], %s347
        %p349 = scmp.lt.s32.totalorder %s29, 1
        %s350 = scalar_select %p349, %s29, 1
        %p351 = scmp.lt.s32.totalorder %s30, 0
        %s352 = scalar_select %p351, %s30, 0
        %s353 = sadd.s32 %s352, %s350
        %s354 = smul.addr %s353, 4
        %s355 = scalar_lea.vmem %s0, %s354
        %p356 = scmp.lt.s32.totalorder %s31, 0
        %s357 = scalar_select %p356, %s31, 0
        %s358 = smul.addr %s357, 8
        %s359 = scalar_lea.vmem %s5, %s358
        %p360 = scmp.eq.s32.totalorder %s31, 0
        // Predicated region
        $region53: #{tpu_custom_call.1} parent=43 // pred_check
          %p361 = pneg %p360
        $region54: #{tpu_custom_call.1} parent=43 // pred_check_branch
          %363 = sbr.rel (%p361) target = $region56
        $region55: #{tpu_custom_call.1} parent=43 // pred_region
          %vm364 = vcmask 253952
          %365 = vst.msk [vmem:[#allocation2] sm:$0x1] %vm364, -inf
          %366 = vst.msk [vmem:[#allocation3] sm:$0x1] %vm364, 0.0
          %vm367 = vcmask 261120
          %368 = vst.msk [vmem:[#allocation4] sm:$0xff] %vm367, 0.0
          %369 = vst.msk [vmem:[#allocation4 + $0x8] sm:$0xff] %vm367, 0.0
        $region56: #{tpu_custom_call.1} parent=43 // pred_fallthru
          _
        %p370 = scmp.lt.s32.totalorder %s31, %s30
        // Predicated region
        $region57: #{tpu_custom_call.1} parent=43 // pred_check
          %p371 = pneg %p370
        $region58: #{tpu_custom_call.1} parent=43 // pred_check_branch
          %373 = sbr.rel (%p371) target = $region60
        $region59: #{tpu_custom_call.1} parent=43 // pred_region
          %v374 = vld [vmem:[%s2] sm:$0xff]
          %v375 = vld [vmem:[%s355] sm:$0xf]
          %v376 = vld [vmem:[#allocation8] sm:$0xff]
          %vm377 = vcmask 31744
          %v379 = vsel %vm377, %v374, 0
          %vm381 = vcmask 1043456
          %v383 = vsel %vm381, %v375, 0
          %385 = vmatpush.msra.mxu0 0.0
          %386 = vmatpush.msra.mxu0 0.0
          %387 = vmatpush.msra.mxu0 0.0
          %388 = vmatpush.msra.mxu0 0.0
          %389 = vmatpush.msra.mxu0 0.0
          %390 = vmatpush.msra.mxu0 0.0
          %391 = vmatpush.msra.mxu0 0.0
          %392 = vmatpush.msra.mxu0 0.0
          %393 = vmatpush.msra.mxu0 0.0
          %394 = vmatpush.msra.mxu0 0.0
          %395 = vmatpush.msra.mxu0 0.0
          %396 = vmatpush.msra.mxu0 0.0
          %397 = vmatpush.msra.mxu0 0.0
          %398 = vmatpush.msra.mxu0 0.0
          %399 = vmatpush.msra.mxu0 0.0
          %400 = vmatpush.msra.mxu0 %v383
          %401 = vmatmul.f32.gmra.mxu0 %v379
          %v402 = vpop.f32.mrf.mxu0
          %v403 = vadd.f32 %v376, %v402
          %404 = vdwg.mxu0
          %v405 = vld [vmem:[%s3] sm:$0xff]
          %v406 = vld [vmem:[%s3 + $0x8] sm:$0xff]
          %v407 = vld [vmem:[%s3 + $0x10] sm:$0xff]
          %v408 = vld [vmem:[%s303] sm:$0xf]
          %v409 = vld [vmem:[%s359] sm:$0xff]
          %v410 = vld [vmem:[%s359 + $0x8] sm:$0xff]
          %v411 = vld [vmem:[%s359 + $0x10] sm:$0xff]
          %v413 = vsel %vm377, %v405, 0
          %v416 = vsel %vm377, %v406, 0
          %v419 = vsel %vm377, %v407, 0
          %v422 = vsel %vm381, %v408, 0
          %424 = vmatpush.msra.mxu0 0.0
          %425 = vmatpush.msra.mxu0 0.0
          %426 = vmatpush.msra.mxu0 0.0
          %427 = vmatpush.msra.mxu0 0.0
          %428 = vmatpush.msra.mxu0 0.0
          %429 = vmatpush.msra.mxu0 0.0
          %430 = vmatpush.msra.mxu0 0.0
          %431 = vmatpush.msra.mxu0 0.0
          %432 = vmatpush.msra.mxu0 0.0
          %433 = vmatpush.msra.mxu0 0.0
          %434 = vmatpush.msra.mxu0 0.0
          %435 = vmatpush.msra.mxu0 0.0
          %436 = vmatpush.msra.mxu0 0.0
          %437 = vmatpush.msra.mxu0 0.0
          %438 = vmatpush.msra.mxu0 0.0
          %439 = vmatpush.msra.mxu0 %v422
          %440 = vmatmul.f32.gmra.mxu0 %v413
          %v441 = vpop.f32.mrf.mxu0
          %v442 = vadd.f32 %v409, %v441
          %443 = vmatmul.f32.gmra.mxu0 %v416
          %v444 = vpop.f32.mrf.mxu0
          %v445 = vadd.f32 %v410, %v444
          %446 = vmatmul.f32.gmra.mxu0 %v419
          %v447 = vpop.f32.mrf.mxu0
          %v448 = vadd.f32 %v411, %v447
          %449 = vdwg.mxu0
          %450 = vxpose.xlu0.b32.start [1/16] %v442, 128
          %451 = vxpose.xlu0.b32.cont [2/16] 0.0, 128
          %452 = vxpose.xlu0.b32.cont [3/16] 0.0, 128
          %453 = vxpose.xlu0.b32.cont [4/16] 0.0, 128
          %454 = vxpose.xlu0.b32.cont [5/16] 0.0, 128
          %455 = vxpose.xlu0.b32.cont [6/16] 0.0, 128
          %456 = vxpose.xlu0.b32.cont [7/16] 0.0, 128
          %457 = vxpose.xlu0.b32.cont [8/16] 0.0, 128
          %458 = vxpose.xlu0.b32.cont [9/16] 0.0, 128
          %459 = vxpose.xlu0.b32.cont [10/16] 0.0, 128
          %460 = vxpose.xlu0.b32.cont [11/16] 0.0, 128
          %461 = vxpose.xlu0.b32.cont [12/16] 0.0, 128
          %462 = vxpose.xlu0.b32.cont [13/16] 0.0, 128
          %463 = vxpose.xlu0.b32.cont [14/16] 0.0, 128
          %464 = vxpose.xlu0.b32.cont [15/16] 0.0, 128
          %465 = vxpose.xlu0.b32.end [16/16] 0.0, 128
          %v466 = vpop.trf.xlu0
          %v467 = vpop.trf.xlu0
          %v468 = vpop.trf.xlu0
          %v469 = vpop.trf.xlu0
          %v470 = vpop.trf.xlu0
          %v471 = vpop.trf.xlu0
          %v472 = vpop.trf.xlu0
          %v473 = vpop.trf.xlu0
          %v474 = vpop.trf.xlu0
          %v475 = vpop.trf.xlu0
          %v476 = vpop.trf.xlu0
          %v477 = vpop.trf.xlu0
          %v478 = vpop.trf.xlu0
          %v479 = vpop.trf.xlu0
          %v480 = vpop.trf.xlu0
          %v481 = vpop.trf.xlu0
          %vm482 = vcmask 64512
          %v484 = vsel %vm482, %v466, 0
          %v487 = vsel %vm482, %v467, 0
          %v490 = vsel %vm482, %v468, 0
          %v493 = vsel %vm482, %v469, 0
          %495 = vmatpush.msra.mxu0 0.0
          %496 = vmatpush.msra.mxu0 0.0
          %497 = vmatpush.msra.mxu0 0.0
          %498 = vmatpush.msra.mxu0 0.0
          %499 = vmatpush.msra.mxu0 0.0
          %500 = vmatpush.msra.mxu0 0.0
          %501 = vmatpush.msra.mxu0 0.0
          %502 = vmatpush.msra.mxu0 0.0
          %503 = vmatpush.msra.mxu0 0.0
          %504 = vmatpush.msra.mxu0 0.0
          %505 = vmatpush.msra.mxu0 0.0
          %506 = vmatpush.msra.mxu0 0.0
          %507 = vmatpush.msra.mxu0 0.0
          %508 = vmatpush.msra.mxu0 0.0
          %509 = vmatpush.msra.mxu0 0.0
          %510 = vmatpush.msra.mxu0 %v403
          %511 = vmatmul.f32.gmra.mxu0 %v484
          %v512 = vpop.f32.mrf.mxu0
          %v513 = vadd.f32 0.0, %v512
          %514 = vmatmul.f32.gmra.mxu0 %v487
          %v515 = vpop.f32.mrf.mxu0
          %v516 = vadd.f32 0.0, %v515
          %517 = vmatmul.f32.gmra.mxu0 %v490
          %v518 = vpop.f32.mrf.mxu0
          %v519 = vadd.f32 0.0, %v518
          %520 = vmatmul.f32.gmra.mxu0 %v493
          %v521 = vpop.f32.mrf.mxu0
          %v522 = vadd.f32 0.0, %v521
          %523 = vdwg.mxu0
          %v524 = vmul.f32 %v513, 0.5
          %v525 = vmul.f32 %v516, 0.5
          %v526 = vmul.f32 %v519, 0.5
          %v527 = vmul.f32 %v522, 0.5
          %v528 = vld [vmem:[#allocation2] sm:$0x1]
          %vm529 = vcmask 261120
          %v530 = vsel %vm529, %v524, -inf
          %v531 = vsel %vm529, %v525, -inf
          %v532 = vsel %vm529, %v526, -inf
          %v533 = vsel %vm529, %v527, -inf
          %v534 = vmax.f32 %v530, %v531
          %v535 = vmax.f32 %v532, %v533
          %v536 = vmax.f32 %v534, %v535
          %v537 = vrot.slane %v536, 4
          %v538 = vmax.f32 %v536, %v537
          %v539 = vrot.slane %v538, 2
          %v540 = vmax.f32 %v538, %v539
          %v541 = vrot.slane %v540, 1
          %v542 = vmax.f32 %v540, %v541
          %v543 = vmax.f32 %v528, %v542
          %v544 = vsub.f32 %v528, %v543
          %v545 = vmul.f32 %v544, 1.442695
          %v546 = vpow.pop %v545
          %v548 = vperm.slane %v543, 0
          %v550 = vsub.f32 %v524, %v548
          %v551 = vsub.f32 %v525, %v548
          %v552 = vsub.f32 %v526, %v548
          %v553 = vsub.f32 %v527, %v548
          %v554 = vmul.f32 %v550, 1.442695
          %v555 = vpow.pop %v554
          %v556 = vmul.f32 %v551, 1.442695
          %v557 = vpow.pop %v556
          %v558 = vmul.f32 %v552, 1.442695
          %v559 = vpow.pop %v558
          %v560 = vmul.f32 %v553, 1.442695
          %v561 = vpow.pop %v560
          %v562 = vld [vmem:[#allocation3] sm:$0x1]
          %v563 = vmul.f32 %v546, %v562
          %v564 = vsel %vm529, %v555, 0.0
          %v565 = vsel %vm529, %v557, 0.0
          %v566 = vadd.f32 %v564, %v565
          %v567 = vsel %vm529, %v559, 0.0
          %v568 = vadd.f32 %v566, %v567
          %v569 = vsel %vm529, %v561, 0.0
          %v570 = vadd.f32 %v568, %v569
          %v571 = vrot.slane %v570, 4
          %v572 = vadd.f32 %v570, %v571
          %v573 = vrot.slane %v572, 2
          %v574 = vadd.f32 %v572, %v573
          %v575 = vrot.slane %v574, 1
          %v576 = vadd.f32 %v574, %v575
          %v577 = vadd.f32 %v563, %v576
          %vm578 = vcmask 253952
          %579 = vst.msk [vmem:[#allocation3] sm:$0x1] %vm578, %v577
          %v580 = vld [vmem:[#allocation4] sm:$0xff]
          %v581 = vld [vmem:[#allocation4 + $0x8] sm:$0xff]
          %v583 = vperm.slane %v546, 0
          %v585 = vmul.f32 %v583, %v580
          %v586 = vmul.f32 %v583, %v581
          %v588 = vsel %vm529, %v445, 0
          %v591 = vsel %vm529, %v448, 0
          %593 = vmatpush.msra.mxu0 0.0
          %594 = vmatpush.msra.mxu0 0.0
          %595 = vmatpush.msra.mxu0 0.0
          %596 = vmatpush.msra.mxu0 0.0
          %597 = vmatpush.msra.mxu0 0.0
          %598 = vmatpush.msra.mxu0 0.0
          %599 = vmatpush.msra.mxu0 0.0
          %600 = vmatpush.msra.mxu0 0.0
          %601 = vmatpush.msra.mxu0 0.0
          %602 = vmatpush.msra.mxu0 0.0
          %603 = vmatpush.msra.mxu0 0.0
          %604 = vmatpush.msra.mxu0 0.0
          %605 = vmatpush.msra.mxu0 %v561
          %606 = vmatpush.msra.mxu0 %v559
          %607 = vmatpush.msra.mxu0 %v557
          %608 = vmatpush.msra.mxu0 %v555
          %609 = vmatmul.f32.gmra.mxu0 %v588
          %v610 = vpop.f32.mrf.mxu0
          %v611 = vadd.f32 0.0, %v610
          %612 = vmatmul.f32.gmra.mxu0 %v591
          %v613 = vpop.f32.mrf.mxu0
          %v614 = vadd.f32 0.0, %v613
          %615 = vdwg.mxu0
          %v616 = vadd.f32 %v585, %v611
          %v617 = vadd.f32 %v586, %v614
          %618 = vst.msk [vmem:[#allocation4] sm:$0xff] %vm529, %v616
          %619 = vst.msk [vmem:[#allocation4 + $0x8] sm:$0xff] %vm529, %v617
          %620 = vst.msk [vmem:[#allocation2] sm:$0x1] %vm578, %v543
        $region60: #{tpu_custom_call.1} parent=43 // pred_fallthru
          _
        %p621 = scmp.eq.s32.totalorder %s31, %s30
        // Predicated region
        $region61: #{tpu_custom_call.1} parent=43 // pred_check
          %p622 = pneg %p621
        $region62: #{tpu_custom_call.1} parent=43 // pred_check_branch
          %624 = sbr.rel (%p622) target = $region64
        $region63: #{tpu_custom_call.1} parent=43 // pred_region
          %v625 = vld [vmem:[%s2] sm:$0xff]
          %v626 = vld [vmem:[%s355] sm:$0xf]
          %v627 = vld [vmem:[#allocation8] sm:$0xff]
          %vm628 = vcmask 31744
          %v630 = vsel %vm628, %v625, 0
          %vm632 = vcmask 1043456
          %v634 = vsel %vm632, %v626, 0
          %636 = vmatpush.msra.mxu0 0.0
          %637 = vmatpush.msra.mxu0 0.0
          %638 = vmatpush.msra.mxu0 0.0
          %639 = vmatpush.msra.mxu0 0.0
          %640 = vmatpush.msra.mxu0 0.0
          %641 = vmatpush.msra.mxu0 0.0
          %642 = vmatpush.msra.mxu0 0.0
          %643 = vmatpush.msra.mxu0 0.0
          %644 = vmatpush.msra.mxu0 0.0
          %645 = vmatpush.msra.mxu0 0.0
          %646 = vmatpush.msra.mxu0 0.0
          %647 = vmatpush.msra.mxu0 0.0
          %648 = vmatpush.msra.mxu0 0.0
          %649 = vmatpush.msra.mxu0 0.0
          %650 = vmatpush.msra.mxu0 0.0
          %651 = vmatpush.msra.mxu0 %v634
          %652 = vmatmul.f32.gmra.mxu0 %v630
          %v653 = vpop.f32.mrf.mxu0
          %v654 = vadd.f32 %v627, %v653
          %655 = vdwg.mxu0
          %v656 = vld [vmem:[%s3] sm:$0xff]
          %v657 = vld [vmem:[%s3 + $0x8] sm:$0xff]
          %v658 = vld [vmem:[%s3 + $0x10] sm:$0xff]
          %v659 = vld [vmem:[%s303] sm:$0xf]
          %v660 = vld [vmem:[%s359] sm:$0xff]
          %v661 = vld [vmem:[%s359 + $0x8] sm:$0xff]
          %v662 = vld [vmem:[%s359 + $0x10] sm:$0xff]
          %v664 = vsel %vm628, %v656, 0
          %v667 = vsel %vm628, %v657, 0
          %v670 = vsel %vm628, %v658, 0
          %v673 = vsel %vm632, %v659, 0
          %675 = vmatpush.msra.mxu0 0.0
          %676 = vmatpush.msra.mxu0 0.0
          %677 = vmatpush.msra.mxu0 0.0
          %678 = vmatpush.msra.mxu0 0.0
          %679 = vmatpush.msra.mxu0 0.0
          %680 = vmatpush.msra.mxu0 0.0
          %681 = vmatpush.msra.mxu0 0.0
          %682 = vmatpush.msra.mxu0 0.0
          %683 = vmatpush.msra.mxu0 0.0
          %684 = vmatpush.msra.mxu0 0.0
          %685 = vmatpush.msra.mxu0 0.0
          %686 = vmatpush.msra.mxu0 0.0
          %687 = vmatpush.msra.mxu0 0.0
          %688 = vmatpush.msra.mxu0 0.0
          %689 = vmatpush.msra.mxu0 0.0
          %690 = vmatpush.msra.mxu0 %v673
          %691 = vmatmul.f32.gmra.mxu0 %v664
          %v692 = vpop.f32.mrf.mxu0
          %v693 = vadd.f32 %v660, %v692
          %694 = vmatmul.f32.gmra.mxu0 %v667
          %v695 = vpop.f32.mrf.mxu0
          %v696 = vadd.f32 %v661, %v695
          %697 = vmatmul.f32.gmra.mxu0 %v670
          %v698 = vpop.f32.mrf.mxu0
          %v699 = vadd.f32 %v662, %v698
          %700 = vdwg.mxu0
          %701 = vxpose.xlu0.b32.start [1/16] %v693, 128
          %702 = vxpose.xlu0.b32.cont [2/16] 0.0, 128
          %703 = vxpose.xlu0.b32.cont [3/16] 0.0, 128
          %704 = vxpose.xlu0.b32.cont [4/16] 0.0, 128
          %705 = vxpose.xlu0.b32.cont [5/16] 0.0, 128
          %706 = vxpose.xlu0.b32.cont [6/16] 0.0, 128
          %707 = vxpose.xlu0.b32.cont [7/16] 0.0, 128
          %708 = vxpose.xlu0.b32.cont [8/16] 0.0, 128
          %709 = vxpose.xlu0.b32.cont [9/16] 0.0, 128
          %710 = vxpose.xlu0.b32.cont [10/16] 0.0, 128
          %711 = vxpose.xlu0.b32.cont [11/16] 0.0, 128
          %712 = vxpose.xlu0.b32.cont [12/16] 0.0, 128
          %713 = vxpose.xlu0.b32.cont [13/16] 0.0, 128
          %714 = vxpose.xlu0.b32.cont [14/16] 0.0, 128
          %715 = vxpose.xlu0.b32.cont [15/16] 0.0, 128
          %716 = vxpose.xlu0.b32.end [16/16] 0.0, 128
          %v717 = vpop.trf.xlu0
          %v718 = vpop.trf.xlu0
          %v719 = vpop.trf.xlu0
          %v720 = vpop.trf.xlu0
          %v721 = vpop.trf.xlu0
          %v722 = vpop.trf.xlu0
          %v723 = vpop.trf.xlu0
          %v724 = vpop.trf.xlu0
          %v725 = vpop.trf.xlu0
          %v726 = vpop.trf.xlu0
          %v727 = vpop.trf.xlu0
          %v728 = vpop.trf.xlu0
          %v729 = vpop.trf.xlu0
          %v730 = vpop.trf.xlu0
          %v731 = vpop.trf.xlu0
          %v732 = vpop.trf.xlu0
          %vm733 = vcmask 64512
          %v735 = vsel %vm733, %v717, 0
          %v738 = vsel %vm733, %v718, 0
          %v741 = vsel %vm733, %v719, 0
          %v744 = vsel %vm733, %v720, 0
          %746 = vmatpush.msra.mxu0 0.0
          %747 = vmatpush.msra.mxu0 0.0
          %748 = vmatpush.msra.mxu0 0.0
          %749 = vmatpush.msra.mxu0 0.0
          %750 = vmatpush.msra.mxu0 0.0
          %751 = vmatpush.msra.mxu0 0.0
          %752 = vmatpush.msra.mxu0 0.0
          %753 = vmatpush.msra.mxu0 0.0
          %754 = vmatpush.msra.mxu0 0.0
          %755 = vmatpush.msra.mxu0 0.0
          %756 = vmatpush.msra.mxu0 0.0
          %757 = vmatpush.msra.mxu0 0.0
          %758 = vmatpush.msra.mxu0 0.0
          %759 = vmatpush.msra.mxu0 0.0
          %760 = vmatpush.msra.mxu0 0.0
          %761 = vmatpush.msra.mxu0 %v654
          %762 = vmatmul.f32.gmra.mxu0 %v735
          %v763 = vpop.f32.mrf.mxu0
          %v764 = vadd.f32 0.0, %v763
          %765 = vmatmul.f32.gmra.mxu0 %v738
          %v766 = vpop.f32.mrf.mxu0
          %v767 = vadd.f32 0.0, %v766
          %768 = vmatmul.f32.gmra.mxu0 %v741
          %v769 = vpop.f32.mrf.mxu0
          %v770 = vadd.f32 0.0, %v769
          %771 = vmatmul.f32.gmra.mxu0 %v744
          %v772 = vpop.f32.mrf.mxu0
          %v773 = vadd.f32 0.0, %v772
          %774 = vdwg.mxu0
          %v775 = vmul.f32 %v764, 0.5
          %v776 = vmul.f32 %v767, 0.5
          %v777 = vmul.f32 %v770, 0.5
          %v778 = vmul.f32 %v773, 0.5
          %s779 = smul.u32 %s31, 32
          %v780 = vlaneseq
          %v781 = vshrl.u32 %v780, 7
          %v782 = vadd.s32 %v781, 8
          %v783 = vadd.s32 %v781, 16
          %v784 = vadd.s32 %v781, 24
          %v785 = vstv %s779
          %v786 = vadd.s32 %v785, %v781
          %v787 = vadd.s32 %v785, %v782
          %v788 = vadd.s32 %v785, %v783
          %v789 = vadd.s32 %v785, %v784
          %s790 = smul.u32 %s30, 32
          %v791 = vlaneseq
          %v792 = vand.u32 %v791, 127
          %v793 = vstv %s790
          %v794 = vadd.s32 %v793, %v792
          %vm795 = vcmp.lt.s32.totalorder %v786, %v794
          %vm796 = vcmp.lt.s32.totalorder %v787, %v794
          %vm797 = vcmp.lt.s32.totalorder %v788, %v794
          %vm798 = vcmp.lt.s32.totalorder %v789, %v794
          %v799 = vsel %vm795, %v775, -1e+30
          %v800 = vsel %vm796, %v776, -1e+30
          %v801 = vsel %vm797, %v777, -1e+30
          %v802 = vsel %vm798, %v778, -1e+30
          %v803 = vld [vmem:[#allocation2] sm:$0x1]
          %vm804 = vcmask 261120
          %v805 = vsel %vm804, %v799, -inf
          %v806 = vsel %vm804, %v800, -inf
          %v807 = vsel %vm804, %v801, -inf
          %v808 = vsel %vm804, %v802, -inf
          %v809 = vmax.f32 %v805, %v806
          %v810 = vmax.f32 %v807, %v808
          %v811 = vmax.f32 %v809, %v810
          %v812 = vrot.slane %v811, 4
          %v813 = vmax.f32 %v811, %v812
          %v814 = vrot.slane %v813, 2
          %v815 = vmax.f32 %v813, %v814
          %v816 = vrot.slane %v815, 1
          %v817 = vmax.f32 %v815, %v816
          %v818 = vmax.f32 %v803, %v817
          %v819 = vsub.f32 %v803, %v818
          %v820 = vmul.f32 %v819, 1.442695
          %v821 = vpow.pop %v820
          %v823 = vperm.slane %v818, 0
          %v825 = vsub.f32 %v799, %v823
          %v826 = vsub.f32 %v800, %v823
          %v827 = vsub.f32 %v801, %v823
          %v828 = vsub.f32 %v802, %v823
          %v829 = vmul.f32 %v825, 1.442695
          %v830 = vpow.pop %v829
          %v831 = vmul.f32 %v826, 1.442695
          %v832 = vpow.pop %v831
          %v833 = vmul.f32 %v827, 1.442695
          %v834 = vpow.pop %v833
          %v835 = vmul.f32 %v828, 1.442695
          %v836 = vpow.pop %v835
          %v837 = vsel %vm795, %v830, 0.0
          %v838 = vsel %vm796, %v832, 0.0
          %v839 = vsel %vm797, %v834, 0.0
          %v840 = vsel %vm798, %v836, 0.0
          %v841 = vld [vmem:[#allocation3] sm:$0x1]
          %v842 = vmul.f32 %v821, %v841
          %v843 = vsel %vm804, %v837, 0.0
          %v844 = vsel %vm804, %v838, 0.0
          %v845 = vadd.f32 %v843, %v844
          %v846 = vsel %vm804, %v839, 0.0
          %v847 = vadd.f32 %v845, %v846
          %v848 = vsel %vm804, %v840, 0.0
          %v849 = vadd.f32 %v847, %v848
          %v850 = vrot.slane %v849, 4
          %v851 = vadd.f32 %v849, %v850
          %v852 = vrot.slane %v851, 2
          %v853 = vadd.f32 %v851, %v852
          %v854 = vrot.slane %v853, 1
          %v855 = vadd.f32 %v853, %v854
          %v856 = vadd.f32 %v842, %v855
          %vm857 = vcmask 253952
          %858 = vst.msk [vmem:[#allocation3] sm:$0x1] %vm857, %v856
          %v859 = vld [vmem:[#allocation4] sm:$0xff]
          %v860 = vld [vmem:[#allocation4 + $0x8] sm:$0xff]
          %v862 = vperm.slane %v821, 0
          %v864 = vmul.f32 %v862, %v859
          %v865 = vmul.f32 %v862, %v860
          %v867 = vsel %vm804, %v696, 0
          %v870 = vsel %vm804, %v699, 0
          %872 = vmatpush.msra.mxu0 0.0
          %873 = vmatpush.msra.mxu0 0.0
          %874 = vmatpush.msra.mxu0 0.0
          %875 = vmatpush.msra.mxu0 0.0
          %876 = vmatpush.msra.mxu0 0.0
          %877 = vmatpush.msra.mxu0 0.0
          %878 = vmatpush.msra.mxu0 0.0
          %879 = vmatpush.msra.mxu0 0.0
          %880 = vmatpush.msra.mxu0 0.0
          %881 = vmatpush.msra.mxu0 0.0
          %882 = vmatpush.msra.mxu0 0.0
          %883 = vmatpush.msra.mxu0 0.0
          %884 = vmatpush.msra.mxu0 %v840
          %885 = vmatpush.msra.mxu0 %v839
          %886 = vmatpush.msra.mxu0 %v838
          %887 = vmatpush.msra.mxu0 %v837
          %888 = vmatmul.f32.gmra.mxu0 %v867
          %v889 = vpop.f32.mrf.mxu0
          %v890 = vadd.f32 0.0, %v889
          %891 = vmatmul.f32.gmra.mxu0 %v870
          %v892 = vpop.f32.mrf.mxu0
          %v893 = vadd.f32 0.0, %v892
          %894 = vdwg.mxu0
          %v895 = vadd.f32 %v864, %v890
          %v896 = vadd.f32 %v865, %v893
          %897 = vst.msk [vmem:[#allocation4] sm:$0xff] %vm804, %v895
          %898 = vst.msk [vmem:[#allocation4 + $0x8] sm:$0xff] %vm804, %v896
          %899 = vst.msk [vmem:[#allocation2] sm:$0x1] %vm857, %v818
          %v900 = vld [vmem:[#allocation3] sm:$0x1]
          %vm901 = vcmp.gt.f32.partialorder %v900, 0.0
          %v902 = vrcp.pop %v900
          %v903 = vsel %vm901, %v902, 0.0
          %v904 = vld [vmem:[#allocation4] sm:$0xff]
          %v905 = vld [vmem:[#allocation4 + $0x8] sm:$0xff]
          %v907 = vperm.slane %v903, 0
          %v909 = vmul.f32 %v904, %v907
          %v910 = vmul.f32 %v905, %v907
          %911 = vst.msk [vmem:[%s348] sm:$0xff] %vm804, %v909
          %912 = vst.msk [vmem:[%s348 + $0x8] sm:$0xff] %vm804, %v910
        $region64: #{tpu_custom_call.1} parent=43 // pred_fallthru
          _
        %s913 = sand.u32 %s203, 1
        %s914 = scalar_lea.sflag [#allocation7], %s913
        %s915 = sand.u32 %s203, 1
        %s916 = smul.addr %s915, 16
        %s917 = scalar_lea.vmem [#allocation10], %s916
        // Predicated region
        $region65: #{tpu_custom_call.1} parent=43 // pred_check
          %p918 = pneg %p213
        $region66: #{tpu_custom_call.1} parent=43 // pred_check_branch
          %920 = sbr.rel (%p918) target = $region68
        $region67: #{tpu_custom_call.1} parent=43 // pred_region
          %922 = vsyncadd %s914, 0
          %s923 = smul.addr %s29, 2
          %s924 = sadd.s32 %s30, %s923
          %s925 = smul.addr %s924, 8
          %s926 = scalar_lea.hbm %s6, %s925
          %s927 = sshll.u32 %s917, 4
          %s928 = int_to_ptr.vmem [resolvable:$true] %s927
          %s929 = sshll.u32 %s926, 4
          %s930 = int_to_ptr.hbm [resolvable:$true] %s929
          %935 = dma.vmem_to_hbm [thread:$0]  %s928, 256, %s930, %s914, 128, 128, 8
        $region68: #{tpu_custom_call.1} parent=43 // pred_fallthru
          _
      $region44: #{tpu_custom_call.1} parent=5 // pred_fallthru
        _
      %p936 = scmp.le.s32.totalorder 2, %s19
      // Predicated region
      $region69: #{tpu_custom_call.1} parent=5 // pred_check
        %p937 = pneg %p936
      $region70: #{tpu_custom_call.1} parent=5 // pred_check_branch
        %939 = sbr.rel (%p937) target = $region72
      $region71: #{tpu_custom_call.1} parent=5 // pred_region
        %s940 = ssub.s32 %s19, 2
        // Predicated region
        $region73: #{tpu_custom_call.1} parent=71 // pred_check
          %p941 = pneg %p219
        $region74: #{tpu_custom_call.1} parent=71 // pred_check_branch
          %943 = sbr.rel (%p941) target = $region76
        $region75: #{tpu_custom_call.1} parent=71 // pred_region
          %s944 = sand.u32 %s204, 1
          %s945 = scalar_lea.sflag [#allocation7], %s944
          %s946 = sand.u32 %s204, 1
          %s947 = smul.addr %s946, 16
          %s948 = scalar_lea.vmem [#allocation10], %s947
          %950 = dma.done %s945, 256
        $region76: #{tpu_custom_call.1} parent=71 // pred_fallthru
          _
      $region72: #{tpu_custom_call.1} parent=5 // pred_fallthru
        _
    $region6: #{tpu_custom_call.1} parent=1 // loop_footer
      %s23 = sadd.s32 1, %s19
    $region7: #{tpu_custom_call.1} parent=1 // loop_footer_branch
      %18 = sbr.rel target = $region3
    $region8: #{tpu_custom_call.1} parent=1 // loop_exit
      _
    %951 = vsyncpa [#allocation6], 1
    %s952 = scalar_lea.sflag [#allocation6], 1
    %953 = vsyncpa %s952, 1
    %954 = vsyncpa [#allocation9], 1
    %955 = vsyncpa [#allocation7], 1
    %s956 = scalar_lea.sflag [#allocation7], 1
    %957 = vsyncpa %s956, 1

</llo_original>
